<compile_context>
chip_gen: v6e
topology: v6e:2x2x1
jax: 0.10.0
libtpu: 0.0.40
codegen_flags: <defaults>
</compile_context>

<pallas_src>
import functools

import jax
import jax.numpy as jnp
from jax.experimental import pallas as pl
from jax.experimental.pallas import tpu as pltpu


def coupled_ode_kernel(node_ref, edge_ref, z0_ref, w_sd_ref, w_eg_ref,
                       w_n_ref, vb_ref, grad_node_ref, grad_edge_ref,
                       *, K, N, D):
    """Single-invocation fused kernel.

    node_ref: (K*N, D)     node latent states (block k, node i at row k*N+i)
    edge_ref: (K*N*N, D)   edge latent states (edge i->j of block k at row
                           k*N*N + i*N + j)
    z0_ref:   (K*N, D)     initial node states
    w_sd_ref: (D, 2D)      [We_src | We_dst]   (column-stacked)
    w_eg_ref: (2D, D)      [We_edge; We_grad]  (row-stacked)
    w_n_ref:  (3D, D)      [Wn_agg; Wn_self; Wn_z0]
    vb_ref:   (3, D)       row 0 = wv (edge-value head), row 1 = be, row 2 = bn
    """
    f32 = jnp.float32
    node = node_ref[...]                                    # [K*N, D]
    edge = edge_ref[...]                                    # [K*N*N, D]
    z0 = z0_ref[...]                                        # [K*N, D]
    vb = vb_ref[...]                                        # [3, D]
    wv_row = vb[0:1, :]                                     # [1, D]
    be = vb[1:2, :]                                         # [1, D]
    bn = vb[2:3, :]                                         # [1, D]

    node3 = node.reshape(K, N, D)

    # ---- edge_ode_func_net --------------------------------------------------
    # Endpoint projections at node granularity (one fused matmul), then
    # broadcast onto the N x N edge grid — no redundant per-edge MXU work.
    p = jnp.dot(node, w_sd_ref[...], preferred_element_type=f32)    # [K*N, 2D]
    p_src = p[:, :D].reshape(K, N, D)[:, :, None, :]                # [K,N,1,D]
    p_dst = p[:, D:].reshape(K, N, D)[:, None, :, :]                # [K,1,N,D]

    pe = jnp.dot(edge, w_eg_ref[0:D, :], preferred_element_type=f32)
    pe = pe.reshape(K, N, N, D)                                     # [K,N,N,D]

    h = jnp.tanh(p_src + p_dst + pe + be)                           # [K,N,N,D]
    grad_edge_ref[...] = jnp.dot(h.reshape(K * N * N, D),
                                 w_eg_ref[D:2 * D, :],
                                 preferred_element_type=f32)        # [K*N*N, D]

    # edge value head (>= 0 for normalize_graph): VPU multiply + lane reduce.
    ev = jax.nn.sigmoid(jnp.sum(h * wv_row, axis=-1, keepdims=True))   # [K,N,N,1]

    # ---- normalize_graph: row-normalize by source out-degree ----------------
    deg = jnp.sum(ev, axis=2, keepdims=True)                            # [K,N,1,1]
    deg_inv = jnp.where(deg == 0.0, jnp.zeros_like(deg), 1.0 / deg)     # pow(-1), inf->0
    a = ev * deg_inv                                                     # [K,N,N,1]

    # ---- node_ode_func_net (one fused [K*N, 3D] @ [3D, D] matmul) -----------
    # agg[k, i] = sum_j A[k, i, j] * node[k, j]  (sublane reduce, no MXU)
    agg = jnp.sum(a * node3[:, None, :, :], axis=2)                      # [K,N,D]
    node_in = jnp.concatenate(
        [agg.reshape(K * N, D), node, z0], axis=-1)                      # [K*N, 3D]
    grad_node_ref[...] = jnp.tanh(
        jnp.dot(node_in, w_n_ref[...], preferred_element_type=f32) + bn)  # [K*N, D]


@functools.partial(jax.jit, static_argnames=("K", "N", "D", "backwards"))
def coupled_ode_forward(t_local, z, node_z0, params, *, K, N, D, backwards=False):
    """Pallas implementation of ODEFunc.forward.

    t_local is ignored by get_ode_gradient_nn (matches the PyTorch module).
    z: [K*N + K*N*N, D]; node_z0: [K*N, D]. Returns grad: [K*N + K*N*N, D].
    """
    del t_local
    KN = K * N
    KNN = K * N * N
    node_attr = z[:KN]                                          # [K*N, D]
    edge_attr = z[KN:]                                          # [K*N*N, D]

    # Pack parameters into a few lane-dense slabs (fewer DMA streams).
    w_sd = jnp.concatenate([params["we_src"], params["we_dst"]], axis=1)    # [D, 2D]
    w_eg = jnp.concatenate([params["we_edge"], params["we_grad"]], axis=0)  # [2D, D]
    w_n = jnp.concatenate(
        [params["wn_agg"], params["wn_self"], params["wn_z0"]], axis=0)     # [3D, D]
    vb = jnp.concatenate(
        [params["wv"].T, params["be"], params["bn"]], axis=0)               # [3, D]

    # TODO(synk): on v6e/v7x the activations/weights could be cast to bf16 for
    # the MXU (f32 accumulate kept); left in f32 to preserve module numerics.
    vmem = pl.BlockSpec(memory_space=pltpu.MemorySpace.VMEM)

    grad_node, grad_edge = pl.pallas_call(
        functools.partial(coupled_ode_kernel, K=K, N=N, D=D),
        out_shape=(
            jax.ShapeDtypeStruct((KN, D), jnp.float32),
            jax.ShapeDtypeStruct((KNN, D), jnp.float32),
        ),
        # No grid: the whole (small) problem is VMEM-resident and handled in
        # one invocation — no per-grid-step overhead / per-step DMA setup, and
        # one weight load serves all K blocks.
        in_specs=[vmem] * 7,
        out_specs=(vmem, vmem),
    )(node_attr, edge_attr, node_z0, w_sd, w_eg, w_n, vb)

    grad = jnp.concatenate([grad_node, grad_edge], axis=0)
    if backwards:
        grad = -grad
    # TODO(synk): nn.Dropout is applied after the gradient nets in training
    # mode; implemented as identity (eval-mode semantics).
    return grad


def reference_forward(z, node_z0, params, K, N, D):
    """Pure-JAX reference with identical semantics (sanity check)."""
    KN = K * N
    node = z[:KN].reshape(K, N, D)
    edge = z[KN:].reshape(K, N, N, D)
    z0 = node_z0.reshape(K, N, D)
    h_src = jnp.einsum("knd,de->kne", node, params["we_src"])[:, :, None, :]
    h_dst = jnp.einsum("knd,de->kne", node, params["we_dst"])[:, None, :, :]
    h = jnp.tanh(h_src + h_dst
                 + jnp.einsum("kijd,de->kije", edge, params["we_edge"])
                 + params["be"][0])
    grad_edge = jnp.einsum("kijd,de->kije", h, params["we_grad"])
    ev = jax.nn.sigmoid(jnp.einsum("kijd,dz->kij", h, params["wv"]))  # [K,N,N]
    deg = jnp.sum(ev, axis=-1, keepdims=True)
    deg_inv = jnp.where(deg == 0.0, 0.0, 1.0 / deg)
    a = ev * deg_inv
    agg = jnp.einsum("kij,kjd->kid", a, node)
    grad_node = jnp.tanh(jnp.einsum("knd,de->kne", agg, params["wn_agg"])
                         + jnp.einsum("knd,de->kne", node, params["wn_self"])
                         + jnp.einsum("knd,de->kne", z0, params["wn_z0"])
                         + params["bn"][0])
    return jnp.concatenate(
        [grad_node.reshape(KN, D), grad_edge.reshape(K * N * N, D)], axis=0)


def init_params(key, D):
    ks = jax.random.split(key, 10)
    sc = 1.0 / jnp.sqrt(D)
    return {
        "we_src": jax.random.normal(ks[0], (D, D), jnp.float32) * sc,
        "we_dst": jax.random.normal(ks[1], (D, D), jnp.float32) * sc,
        "we_edge": jax.random.normal(ks[2], (D, D), jnp.float32) * sc,
        "we_grad": jax.random.normal(ks[3], (D, D), jnp.float32) * sc,
        "wv": jax.random.normal(ks[4], (D, 1), jnp.float32) * sc,
        "be": jax.random.normal(ks[5], (1, D), jnp.float32) * 0.1,
        "wn_agg": jax.random.normal(ks[6], (D, D), jnp.float32) * sc,
        "wn_self": jax.random.normal(ks[7], (D, D), jnp.float32) * sc,
        "wn_z0": jax.random.normal(ks[8], (D, D), jnp.float32) * sc,
        "bn": jax.random.normal(ks[9], (1, D), jnp.float32) * 0.1,
    }


if __name__ == "__main__":
    K = 2            # number of temporal/graph blocks
    N = 4            # num_atom (nodes per block)
    D = 128          # latent dim (lane-dense: minor dim = 128)
    KN = K * N
    KNN = K * N * N

    key = jax.random.PRNGKey(0)
    kz, kz0, kp = jax.random.split(key, 3)
    z = jax.random.normal(kz, (KN + KNN, D), jnp.float32)     # [K*N + K*N*N, D]
    node_z0 = jax.random.normal(kz0, (KN, D), jnp.float32)    # [K*N, D]
    params = init_params(kp, D)
    t_local = jnp.float32(0.5)

    grad = coupled_ode_forward(t_local, z, node_z0, params, K=K, N=N, D=D)
    grad = jax.block_until_ready(grad)

    ref = reference_forward(z, node_z0, params, K, N, D)
    assert grad.shape == (KN + KNN, D)
    err = jnp.max(jnp.abs(grad - ref))
    assert err < 2e-3, f"mismatch vs reference: {err}"

    # also exercise the backwards=True path (grad negation in ODEFunc.forward)
    grad_b = jax.block_until_ready(
        coupled_ode_forward(t_local, z, node_z0, params, K=K, N=N, D=D,
                            backwards=True))
    assert jnp.max(jnp.abs(grad_b + grad)) < 1e-6

    print("KERNEL_OK")
</pallas_src>

<mosaic_0001>
module attributes {stable_mosaic.version = 11 : i64} {
  func.func @coupled_ode_kernel(%arg0: memref<8x128xf32, #tpu.memory_space<vmem>>, %arg1: memref<32x128xf32, #tpu.memory_space<vmem>>, %arg2: memref<8x128xf32, #tpu.memory_space<vmem>>, %arg3: memref<128x256xf32, #tpu.memory_space<vmem>>, %arg4: memref<256x128xf32, #tpu.memory_space<vmem>>, %arg5: memref<384x128xf32, #tpu.memory_space<vmem>>, %arg6: memref<3x128xf32, #tpu.memory_space<vmem>>, %arg7: memref<8x128xf32, #tpu.memory_space<vmem>>, %arg8: memref<32x128xf32, #tpu.memory_space<vmem>>) attributes {dimension_semantics = [], scalar_prefetch = 0 : i64, scratch_operands = 0 : i64, tpu.core_type = #tpu.core_type<tc>} {
    %c0 = arith.constant 0 : index
    %c0_0 = arith.constant 0 : index
    %0 = vector.load %arg0[%c0, %c0_0] : memref<8x128xf32, #tpu.memory_space<vmem>>, vector<8x128xf32>
    %c0_1 = arith.constant 0 : index
    %c0_2 = arith.constant 0 : index
    %1 = vector.load %arg1[%c0_1, %c0_2] : memref<32x128xf32, #tpu.memory_space<vmem>>, vector<32x128xf32>
    %c0_3 = arith.constant 0 : index
    %c0_4 = arith.constant 0 : index
    %2 = vector.load %arg2[%c0_3, %c0_4] : memref<8x128xf32, #tpu.memory_space<vmem>>, vector<8x128xf32>
    %c0_5 = arith.constant 0 : index
    %c0_6 = arith.constant 0 : index
    %3 = vector.load %arg6[%c0_5, %c0_6] : memref<3x128xf32, #tpu.memory_space<vmem>>, vector<3x128xf32>
    %4 = vector.extract_strided_slice %3 {offsets = [0, 0], sizes = [1, 128], strides = [1, 1]} : vector<3x128xf32> to vector<1x128xf32>
    %5 = vector.extract_strided_slice %3 {offsets = [1, 0], sizes = [1, 128], strides = [1, 1]} : vector<3x128xf32> to vector<1x128xf32>
    %6 = vector.extract_strided_slice %3 {offsets = [2, 0], sizes = [1, 128], strides = [1, 1]} : vector<3x128xf32> to vector<1x128xf32>
    %7 = vector.shape_cast %0 : vector<8x128xf32> to vector<2x4x128xf32>
    %c0_7 = arith.constant 0 : index
    %c0_8 = arith.constant 0 : index
    %8 = vector.load %arg3[%c0_7, %c0_8] : memref<128x256xf32, #tpu.memory_space<vmem>>, vector<128x256xf32>
    %cst = arith.constant dense<0.000000e+00> : vector<8x256xf32>
    %9 = tpu.matmul %0, %8, %cst {dimension_numbers = #tpu.dot_dimension_numbers<[1], [0], [0], [1], [0, 0, 1, 1], [], []>} : vector<8x128xf32>, vector<128x256xf32>, vector<8x256xf32> -> vector<8x256xf32>
    %10 = vector.extract_strided_slice %9 {offsets = [0, 0], sizes = [8, 128], strides = [1, 1]} : vector<8x256xf32> to vector<8x128xf32>
    %11 = vector.shape_cast %10 : vector<8x128xf32> to vector<2x4x128xf32>
    %12 = vector.shape_cast %11 : vector<2x4x128xf32> to vector<2x4x1x128xf32>
    %13 = vector.extract_strided_slice %9 {offsets = [0, 128], sizes = [8, 128], strides = [1, 1]} : vector<8x256xf32> to vector<8x128xf32>
    %14 = vector.shape_cast %13 : vector<8x128xf32> to vector<2x4x128xf32>
    %15 = vector.shape_cast %14 : vector<2x4x128xf32> to vector<2x1x4x128xf32>
    %c0_9 = arith.constant 0 : index
    %c0_10 = arith.constant 0 : index
    %16 = vector.load %arg4[%c0_9, %c0_10] : memref<256x128xf32, #tpu.memory_space<vmem>>, vector<128x128xf32>
    %cst_11 = arith.constant dense<0.000000e+00> : vector<32x128xf32>
    %17 = tpu.matmul %1, %16, %cst_11 {dimension_numbers = #tpu.dot_dimension_numbers<[1], [0], [0], [1], [0, 0, 1, 1], [], []>} : vector<32x128xf32>, vector<128x128xf32>, vector<32x128xf32> -> vector<32x128xf32>
    %18 = vector.shape_cast %17 : vector<32x128xf32> to vector<2x4x4x128xf32>
    %19 = vector.broadcast %12 : vector<2x4x1x128xf32> to vector<2x4x4x128xf32>
    %20 = vector.broadcast %15 : vector<2x1x4x128xf32> to vector<2x4x4x128xf32>
    %21 = arith.addf %19, %20 : vector<2x4x4x128xf32>
    %22 = arith.addf %21, %18 : vector<2x4x4x128xf32>
    %23 = vector.shape_cast %5 : vector<1x128xf32> to vector<1x1x1x128xf32>
    %24 = vector.broadcast %23 : vector<1x1x1x128xf32> to vector<2x4x4x128xf32>
    %25 = arith.addf %22, %24 : vector<2x4x4x128xf32>
    %26 = math.tanh %25 : vector<2x4x4x128xf32>
    %27 = vector.shape_cast %26 : vector<2x4x4x128xf32> to vector<32x128xf32>
    %c128 = arith.constant 128 : index
    %c0_12 = arith.constant 0 : index
    %28 = vector.load %arg4[%c128, %c0_12] : memref<256x128xf32, #tpu.memory_space<vmem>>, vector<128x128xf32>
    %cst_13 = arith.constant dense<0.000000e+00> : vector<32x128xf32>
    %29 = tpu.matmul %27, %28, %cst_13 {dimension_numbers = #tpu.dot_dimension_numbers<[1], [0], [0], [1], [0, 0, 1, 1], [], []>} : vector<32x128xf32>, vector<128x128xf32>, vector<32x128xf32> -> vector<32x128xf32>
    %c0_14 = arith.constant 0 : index
    %c0_15 = arith.constant 0 : index
    %30 = vector.load %arg8[%c0_14, %c0_15] : memref<32x128xf32, #tpu.memory_space<vmem>>, vector<32x128xf32>
    tpu.vector_store %arg8[%c0_14, %c0_15], %29 {strides = array<i32>} : memref<32x128xf32, #tpu.memory_space<vmem>>, vector<32x128xf32>,
    %31 = vector.shape_cast %4 : vector<1x128xf32> to vector<1x1x1x128xf32>
    %32 = vector.broadcast %31 : vector<1x1x1x128xf32> to vector<2x4x4x128xf32>
    %33 = arith.mulf %26, %32 : vector<2x4x4x128xf32>
    %cst_16 = arith.constant dense<0.000000e+00> : vector<2x4x4xf32>
    %34 = vector.multi_reduction <add>, %33, %cst_16 [3] : vector<2x4x4x128xf32> to vector<2x4x4xf32>
    %35 = vector.shape_cast %34 : vector<2x4x4xf32> to vector<2x4x4x1xf32>
    %36 = arith.negf %35 : vector<2x4x4x1xf32>
    %37 = math.exp %36 : vector<2x4x4x1xf32>
    %cst_17 = arith.constant 1.000000e+00 : f32
    %38 = vector.broadcast %cst_17 : f32 to vector<2x4x4x1xf32>
    %39 = arith.addf %38, %37 : vector<2x4x4x1xf32>
    %40 = arith.divf %38, %39 : vector<2x4x4x1xf32>
    %cst_18 = arith.constant dense<0.000000e+00> : vector<2x4x1xf32>
    %41 = vector.multi_reduction <add>, %40, %cst_18 [2] : vector<2x4x4x1xf32> to vector<2x4x1xf32>
    %42 = vector.shape_cast %41 : vector<2x4x1xf32> to vector<2x4x1x1xf32>
    %cst_19 = arith.constant 0.000000e+00 : f32
    %43 = vector.broadcast %cst_19 : f32 to vector<2x4x1x1xf32>
    %44 = arith.cmpf oeq, %42, %43 : vector<2x4x1x1xf32>
    %cst_20 = arith.constant 0.000000e+00 : f32
    %45 = vector.broadcast %cst_20 : f32 to vector<2x4x1x1xf32>
    %cst_21 = arith.constant 1.000000e+00 : f32
    %46 = vector.broadcast %cst_21 : f32 to vector<2x4x1x1xf32>
    %47 = arith.divf %46, %42 : vector<2x4x1x1xf32>
    %48 = arith.select %44, %45, %47 : vector<2x4x1x1xi1>, vector<2x4x1x1xf32>
    %49 = vector.broadcast %48 : vector<2x4x1x1xf32> to vector<2x4x4x1xf32>
    %50 = arith.mulf %40, %49 : vector<2x4x4x1xf32>
    %51 = vector.shape_cast %7 : vector<2x4x128xf32> to vector<2x1x4x128xf32>
    %52 = vector.broadcast %50 : vector<2x4x4x1xf32> to vector<2x4x4x128xf32>
    %53 = vector.broadcast %51 : vector<2x1x4x128xf32> to vector<2x4x4x128xf32>
    %54 = arith.mulf %52, %53 : vector<2x4x4x128xf32>
    %cst_22 = arith.constant dense<0.000000e+00> : vector<2x4x128xf32>
    %55 = vector.multi_reduction <add>, %54, %cst_22 [2] : vector<2x4x4x128xf32> to vector<2x4x128xf32>
    %56 = vector.shape_cast %55 : vector<2x4x128xf32> to vector<8x128xf32>
    %57 = tpu.concatenate %56, %0, %2 in 1 : vector<8x128xf32>, vector<8x128xf32>, vector<8x128xf32> -> vector<8x384xf32>
    %c0_23 = arith.constant 0 : index
    %c0_24 = arith.constant 0 : index
    %58 = vector.load %arg5[%c0_23, %c0_24] : memref<384x128xf32, #tpu.memory_space<vmem>>, vector<384x128xf32>
    %cst_25 = arith.constant dense<0.000000e+00> : vector<8x128xf32>
    %59 = tpu.matmul %57, %58, %cst_25 {dimension_numbers = #tpu.dot_dimension_numbers<[1], [0], [0], [1], [0, 0, 1, 1], [], []>} : vector<8x384xf32>, vector<384x128xf32>, vector<8x128xf32> -> vector<8x128xf32>
    %60 = vector.broadcast %6 : vector<1x128xf32> to vector<8x128xf32>
    %61 = arith.addf %59, %60 : vector<8x128xf32>
    %62 = math.tanh %61 : vector<8x128xf32>
    %c0_26 = arith.constant 0 : index
    %c0_27 = arith.constant 0 : index
    %63 = vector.load %arg7[%c0_26, %c0_27] : memref<8x128xf32, #tpu.memory_space<vmem>>, vector<8x128xf32>
    tpu.vector_store %arg7[%c0_26, %c0_27], %62 {strides = array<i32>} : memref<8x128xf32, #tpu.memory_space<vmem>>, vector<8x128xf32>,
    return
  }
}

</mosaic_0001>

<llo_original>
// kernel: coupled_ode_forward.1
$region0: #{coupled_ode_forward.1}
  #allocation0 [shape = 'u32[]', space=smem, size = 0x4, offset = 0x4, fixed_abs, tag = 'smem constant byte address 0x4 - core index']
  #allocation1 [shape = 'u32[144,128]{1,0:T(1,128)}', space=vmem, size = 0x12000, scoped, tag = 'internal scratch']
  %s0 = inlined_call_operand.vmem [shape: f32[8,128], index: 0, kind: input, shape index: {}]
  %s1 = inlined_call_operand.vmem [shape: f32[32,128], index: 1, kind: input, shape index: {}]
  %s2 = inlined_call_operand.vmem [shape: f32[8,128], index: 2, kind: input, shape index: {}]
  %s3 = inlined_call_operand.vmem [shape: f32[128,256], index: 3, kind: input, shape index: {}]
  %s4 = inlined_call_operand.vmem [shape: f32[256,128], index: 4, kind: input, shape index: {}]
  %s5 = inlined_call_operand.vmem [shape: f32[384,128], index: 5, kind: input, shape index: {}]
  %s6 = inlined_call_operand.vmem [shape: f32[3,128], index: 6, kind: input, shape index: {}]
  %s7 = inlined_call_operand.vmem [shape: f32[8,128], index: 7, kind: output, shape index: {0}]
  %s8 = inlined_call_operand.vmem [shape: f32[32,128], index: 8, kind: output, shape index: {1}]
  %9 = xla_tuple %s7, %s8
  %s10 = sld [smem:[#allocation0]]
  $region46: #{coupled_ode_forward.1} parent=0
    _
  %s12 = ssub.s32 1, %s10
  %s13 = scalar_select 0, %s12, %s10
  // Predicated region
  $region2: #{coupled_ode_forward.1} parent=0 // pred_check
    _
  $region3: #{coupled_ode_forward.1} parent=0 // pred_check_branch
    %15 = sbr.rel (0) target = $region5
  $region4: #{coupled_ode_forward.1} parent=0 // pred_region
    _
  $region5: #{coupled_ode_forward.1} parent=0 // pred_fallthru
    _
  // Predicated region
  $region6: #{coupled_ode_forward.1} parent=0 // pred_check
    _
  $region7: #{coupled_ode_forward.1} parent=0 // pred_check_branch
    %17 = sbr.rel (0) target = $region9
  $region8: #{coupled_ode_forward.1} parent=0 // pred_region
    _
  $region9: #{coupled_ode_forward.1} parent=0 // pred_fallthru
    _
  // Predicated region
  $region10: #{coupled_ode_forward.1} parent=0 // pred_check
    _
  $region11: #{coupled_ode_forward.1} parent=0 // pred_check_branch
    %19 = sbr.rel (0) target = $region13
  $region12: #{coupled_ode_forward.1} parent=0 // pred_region
    _
  $region13: #{coupled_ode_forward.1} parent=0 // pred_fallthru
    _
  // Predicated region
  $region14: #{coupled_ode_forward.1} parent=0 // pred_check
    _
  $region15: #{coupled_ode_forward.1} parent=0 // pred_check_branch
    %21 = sbr.rel (0) target = $region17
  $region16: #{coupled_ode_forward.1} parent=0 // pred_region
    _
  $region17: #{coupled_ode_forward.1} parent=0 // pred_fallthru
    _
  // Predicated region
  $region18: #{coupled_ode_forward.1} parent=0 // pred_check
    _
  $region19: #{coupled_ode_forward.1} parent=0 // pred_check_branch
    %23 = sbr.rel (0) target = $region21
  $region20: #{coupled_ode_forward.1} parent=0 // pred_region
    _
  $region21: #{coupled_ode_forward.1} parent=0 // pred_fallthru
    _
  // Predicated region
  $region22: #{coupled_ode_forward.1} parent=0 // pred_check
    _
  $region23: #{coupled_ode_forward.1} parent=0 // pred_check_branch
    %25 = sbr.rel (0) target = $region25
  $region24: #{coupled_ode_forward.1} parent=0 // pred_region
    _
  $region25: #{coupled_ode_forward.1} parent=0 // pred_fallthru
    _
  // Predicated region
  $region26: #{coupled_ode_forward.1} parent=0 // pred_check
    _
  $region27: #{coupled_ode_forward.1} parent=0 // pred_check_branch
    %27 = sbr.rel (0) target = $region29
  $region28: #{coupled_ode_forward.1} parent=0 // pred_region
    _
  $region29: #{coupled_ode_forward.1} parent=0 // pred_fallthru
    _
  %v28 = vld [vmem:[%s0] sm:$0xff]
  %v29 = vld [vmem:[%s1] sm:$0xff]
  %v30 = vld [vmem:[%s1 + $0x8] sm:$0xff]
  %v31 = vld [vmem:[%s1 + $0x10] sm:$0xff]
  %v32 = vld [vmem:[%s1 + $0x18] sm:$0xff]
  %v33 = vld [vmem:[%s2] sm:$0xff]
  %v34 = vld [vmem:[%s6] sm:$0x7]
  %v35 = vld [vmem:[%s3] sm:$0xff]
  %v36 = vld [vmem:[%s3 + $0x8] sm:$0xff]
  %v37 = vld [vmem:[%s3 + $0x10] sm:$0xff]
  %v38 = vld [vmem:[%s3 + $0x18] sm:$0xff]
  %v39 = vld [vmem:[%s3 + $0x20] sm:$0xff]
  %v40 = vld [vmem:[%s3 + $0x28] sm:$0xff]
  %v41 = vld [vmem:[%s3 + $0x30] sm:$0xff]
  %v42 = vld [vmem:[%s3 + $0x38] sm:$0xff]
  %v43 = vld [vmem:[%s3 + $0x40] sm:$0xff]
  %v44 = vld [vmem:[%s3 + $0x48] sm:$0xff]
  %v45 = vld [vmem:[%s3 + $0x50] sm:$0xff]
  %v46 = vld [vmem:[%s3 + $0x58] sm:$0xff]
  %v47 = vld [vmem:[%s3 + $0x60] sm:$0xff]
  %v48 = vld [vmem:[%s3 + $0x68] sm:$0xff]
  %v49 = vld [vmem:[%s3 + $0x70] sm:$0xff]
  %v50 = vld [vmem:[%s3 + $0x78] sm:$0xff]
  %v51 = vld [vmem:[%s3 + $0x80] sm:$0xff]
  %v52 = vld [vmem:[%s3 + $0x88] sm:$0xff]
  %v53 = vld [vmem:[%s3 + $0x90] sm:$0xff]
  %v54 = vld [vmem:[%s3 + $0x98] sm:$0xff]
  %v55 = vld [vmem:[%s3 + $0xa0] sm:$0xff]
  %v56 = vld [vmem:[%s3 + $0xa8] sm:$0xff]
  %v57 = vld [vmem:[%s3 + $0xb0] sm:$0xff]
  %v58 = vld [vmem:[%s3 + $0xb8] sm:$0xff]
  %v59 = vld [vmem:[%s3 + $0xc0] sm:$0xff]
  %v60 = vld [vmem:[%s3 + $0xc8] sm:$0xff]
  %v61 = vld [vmem:[%s3 + $0xd0] sm:$0xff]
  %v62 = vld [vmem:[%s3 + $0xd8] sm:$0xff]
  %v63 = vld [vmem:[%s3 + $0xe0] sm:$0xff]
  %v64 = vld [vmem:[%s3 + $0xe8] sm:$0xff]
  %v65 = vld [vmem:[%s3 + $0xf0] sm:$0xff]
  %v66 = vld [vmem:[%s3 + $0xf8] sm:$0xff]
  %67 = vmatprep.subr.mxu0 %v66
  %68 = vmatpush1.msra.mxu0 %v65
  %69 = vmatprep.subr.mxu0 %v64
  %70 = vmatpush1.msra.mxu0 %v63
  %71 = vmatprep.subr.mxu0 %v62
  %72 = vmatpush1.msra.mxu0 %v61
  %73 = vmatprep.subr.mxu0 %v60
  %74 = vmatpush1.msra.mxu0 %v59
  %75 = vmatprep.subr.mxu0 %v58
  %76 = vmatpush1.msra.mxu0 %v57
  %77 = vmatprep.subr.mxu0 %v56
  %78 = vmatpush1.msra.mxu0 %v55
  %79 = vmatprep.subr.mxu0 %v54
  %80 = vmatpush1.msra.mxu0 %v53
  %81 = vmatprep.subr.mxu0 %v52
  %82 = vmatpush1.msra.mxu0 %v51
  %83 = vmatprep.subr.mxu0 %v50
  %84 = vmatpush1.msra.mxu0 %v49
  %85 = vmatprep.subr.mxu0 %v48
  %86 = vmatpush1.msra.mxu0 %v47
  %87 = vmatprep.subr.mxu0 %v46
  %88 = vmatpush1.msra.mxu0 %v45
  %89 = vmatprep.subr.mxu0 %v44
  %90 = vmatpush1.msra.mxu0 %v43
  %91 = vmatprep.subr.mxu0 %v42
  %92 = vmatpush1.msra.mxu0 %v41
  %93 = vmatprep.subr.mxu0 %v40
  %94 = vmatpush1.msra.mxu0 %v39
  %95 = vmatprep.subr.mxu0 %v38
  %96 = vmatpush1.msra.mxu0 %v37
  %97 = vmatprep.subr.mxu0 %v36
  %98 = vmatpush1.msra.mxu0 %v35
  %99 = vmatprep.subr.mxu0 0.0
  %100 = vmatpush2.msra.mxu0 0.0
  %101 = vmatprep.subr.mxu0 0.0
  %102 = vmatpush2.msra.mxu0 0.0
  %103 = vmatprep.subr.mxu0 0.0
  %104 = vmatpush2.msra.mxu0 0.0
  %105 = vmatprep.subr.mxu0 0.0
  %106 = vmatpush2.msra.mxu0 0.0
  %107 = vmatprep.subr.mxu0 0.0
  %108 = vmatpush2.msra.mxu0 0.0
  %109 = vmatprep.subr.mxu0 0.0
  %110 = vmatpush2.msra.mxu0 0.0
  %111 = vmatprep.subr.mxu0 0.0
  %112 = vmatpush2.msra.mxu0 0.0
  %113 = vmatprep.subr.mxu0 0.0
  %114 = vmatpush2.msra.mxu0 0.0
  %115 = vmatprep.subr.mxu0 0.0
  %116 = vmatpush2.msra.mxu0 0.0
  %117 = vmatprep.subr.mxu0 0.0
  %118 = vmatpush2.msra.mxu0 0.0
  %119 = vmatprep.subr.mxu0 0.0
  %120 = vmatpush2.msra.mxu0 0.0
  %121 = vmatprep.subr.mxu0 0.0
  %122 = vmatpush2.msra.mxu0 0.0
  %123 = vmatprep.subr.mxu0 0.0
  %124 = vmatpush2.msra.mxu0 0.0
  %125 = vmatprep.subr.mxu0 0.0
  %126 = vmatpush2.msra.mxu0 0.0
  %127 = vmatprep.subr.mxu0 0.0
  %128 = vmatpush2.msra.mxu0 0.0
  %129 = vmatprep.subr.mxu0 0.0
  %130 = vmatpush2.msra.mxu0 0.0
  %131 = vmatprep.mubr.f32.mxu0 0.0
  %132 = vmatmul.mubr.f32.gmra.mxu0 %v28
  %v133 = vpop.f32.mrf.mxu0
  %v134 = vadd.f32 0.0, %v133
  %v135 = vpop.f32.mrf.mxu0
  %v136 = vadd.f32 0.0, %v135
  %137 = vdwg.mxu0
  %v139 = vcombine.high %v134, %v134
  %v141 = vunpack.c.l.s4 1966171168
  %v142 = vunpack.c.0.s8 %v141
  %v143 = vlaneseq
  %v144 = vshrl.u32 %v143, 7
  %v145 = vsub.s32 %v142, %v144
  %v146 = vrot.slane %v134, %v145
  %v148 = vunpack.c.l.s4 1966171168
  %v149 = vunpack.c.0.s8 %v148
  %v150 = vlaneseq
  %v151 = vshrl.u32 %v150, 7
  %v152 = vsub.s32 %v149, %v151
  %v153 = vrot.slane %v139, %v152
  %v154 = vcombine.high %v146, %v146
  %v155 = vcombine.high %v153, %v153
  %v157 = vunpack.c.l.s4 1966171168
  %v158 = vunpack.c.0.s8 %v157
  %v159 = vlaneseq
  %v160 = vshrl.u32 %v159, 7
  %v161 = vsub.s32 %v158, %v160
  %v162 = vrot.slane %v146, %v161
  %v164 = vunpack.c.l.s4 1966171168
  %v165 = vunpack.c.0.s8 %v164
  %v166 = vlaneseq
  %v167 = vshrl.u32 %v166, 7
  %v168 = vsub.s32 %v165, %v167
  %v169 = vrot.slane %v153, %v168
  %v171 = vunpack.c.l.s4 1966171168
  %v172 = vunpack.c.0.s8 %v171
  %v173 = vlaneseq
  %v174 = vshrl.u32 %v173, 7
  %v175 = vsub.s32 %v172, %v174
  %v176 = vrot.slane %v154, %v175
  %v178 = vunpack.c.l.s4 1966171168
  %v179 = vunpack.c.0.s8 %v178
  %v180 = vlaneseq
  %v181 = vshrl.u32 %v180, 7
  %v182 = vsub.s32 %v179, %v181
  %v183 = vrot.slane %v155, %v182
  %v184 = vcombine.high %v162, %v162
  %v185 = vcombine.high %v169, %v169
  %v186 = vcombine.high %v176, %v176
  %v187 = vcombine.high %v183, %v183
  %v189 = vcombine.high %v136, %v136
  %v191 = vld [vmem:[%s4] sm:$0xff]
  %v192 = vld [vmem:[%s4 + $0x8] sm:$0xff]
  %v193 = vld [vmem:[%s4 + $0x10] sm:$0xff]
  %v194 = vld [vmem:[%s4 + $0x18] sm:$0xff]
  %v195 = vld [vmem:[%s4 + $0x20] sm:$0xff]
  %v196 = vld [vmem:[%s4 + $0x28] sm:$0xff]
  %v197 = vld [vmem:[%s4 + $0x30] sm:$0xff]
  %v198 = vld [vmem:[%s4 + $0x38] sm:$0xff]
  %v199 = vld [vmem:[%s4 + $0x40] sm:$0xff]
  %v200 = vld [vmem:[%s4 + $0x48] sm:$0xff]
  %v201 = vld [vmem:[%s4 + $0x50] sm:$0xff]
  %v202 = vld [vmem:[%s4 + $0x58] sm:$0xff]
  %v203 = vld [vmem:[%s4 + $0x60] sm:$0xff]
  %v204 = vld [vmem:[%s4 + $0x68] sm:$0xff]
  %v205 = vld [vmem:[%s4 + $0x70] sm:$0xff]
  %v206 = vld [vmem:[%s4 + $0x78] sm:$0xff]
  %207 = vmatprep.subr.mxu0 0.0
  %208 = vmatpush1.msra.mxu0 %v206
  %209 = vmatprep.subr.mxu0 0.0
  %210 = vmatpush1.msra.mxu0 %v205
  %211 = vmatprep.subr.mxu0 0.0
  %212 = vmatpush1.msra.mxu0 %v204
  %213 = vmatprep.subr.mxu0 0.0
  %214 = vmatpush1.msra.mxu0 %v203
  %215 = vmatprep.subr.mxu0 0.0
  %216 = vmatpush1.msra.mxu0 %v202
  %217 = vmatprep.subr.mxu0 0.0
  %218 = vmatpush1.msra.mxu0 %v201
  %219 = vmatprep.subr.mxu0 0.0
  %220 = vmatpush1.msra.mxu0 %v200
  %221 = vmatprep.subr.mxu0 0.0
  %222 = vmatpush1.msra.mxu0 %v199
  %223 = vmatprep.subr.mxu0 0.0
  %224 = vmatpush1.msra.mxu0 %v198
  %225 = vmatprep.subr.mxu0 0.0
  %226 = vmatpush1.msra.mxu0 %v197
  %227 = vmatprep.subr.mxu0 0.0
  %228 = vmatpush1.msra.mxu0 %v196
  %229 = vmatprep.subr.mxu0 0.0
  %230 = vmatpush1.msra.mxu0 %v195
  %231 = vmatprep.subr.mxu0 0.0
  %232 = vmatpush1.msra.mxu0 %v194
  %233 = vmatprep.subr.mxu0 0.0
  %234 = vmatpush1.msra.mxu0 %v193
  %235 = vmatprep.subr.mxu0 0.0
  %236 = vmatpush1.msra.mxu0 %v192
  %237 = vmatprep.subr.mxu0 0.0
  %238 = vmatpush1.msra.mxu0 %v191
  %239 = vmatprep.subr.mxu0 0.0
  %240 = vmatpush2.msra.mxu0 0.0
  %241 = vmatprep.subr.mxu0 0.0
  %242 = vmatpush2.msra.mxu0 0.0
  %243 = vmatprep.subr.mxu0 0.0
  %244 = vmatpush2.msra.mxu0 0.0
  %245 = vmatprep.subr.mxu0 0.0
  %246 = vmatpush2.msra.mxu0 0.0
  %247 = vmatprep.subr.mxu0 0.0
  %248 = vmatpush2.msra.mxu0 0.0
  %249 = vmatprep.subr.mxu0 0.0
  %250 = vmatpush2.msra.mxu0 0.0
  %251 = vmatprep.subr.mxu0 0.0
  %252 = vmatpush2.msra.mxu0 0.0
  %253 = vmatprep.subr.mxu0 0.0
  %254 = vmatpush2.msra.mxu0 0.0
  %255 = vmatprep.subr.mxu0 0.0
  %256 = vmatpush2.msra.mxu0 0.0
  %257 = vmatprep.subr.mxu0 0.0
  %258 = vmatpush2.msra.mxu0 0.0
  %259 = vmatprep.subr.mxu0 0.0
  %260 = vmatpush2.msra.mxu0 0.0
  %261 = vmatprep.subr.mxu0 0.0
  %262 = vmatpush2.msra.mxu0 0.0
  %263 = vmatprep.subr.mxu0 0.0
  %264 = vmatpush2.msra.mxu0 0.0
  %265 = vmatprep.subr.mxu0 0.0
  %266 = vmatpush2.msra.mxu0 0.0
  %267 = vmatprep.subr.mxu0 0.0
  %268 = vmatpush2.msra.mxu0 0.0
  %269 = vmatprep.subr.mxu0 0.0
  %270 = vmatpush2.msra.mxu0 0.0
  %271 = vmatprep.mubr.f32.mxu0 0.0
  %272 = vmatmul.mubr.f32.gmra.mxu0 %v29
  %v273 = vpop.f32.mrf.mxu0
  %v274 = vadd.f32 0.0, %v273
  %v275 = vpop.f32.mrf.mxu0
  %276 = vmatprep.mubr.f32.mxu0 0.0
  %277 = vmatmul.mubr.f32.gmra.mxu0 %v30
  %v278 = vpop.f32.mrf.mxu0
  %v279 = vadd.f32 0.0, %v278
  %v280 = vpop.f32.mrf.mxu0
  %281 = vmatprep.mubr.f32.mxu0 0.0
  %282 = vmatmul.mubr.f32.gmra.mxu0 %v31
  %v283 = vpop.f32.mrf.mxu0
  %v284 = vadd.f32 0.0, %v283
  %v285 = vpop.f32.mrf.mxu0
  %286 = vmatprep.mubr.f32.mxu0 0.0
  %287 = vmatmul.mubr.f32.gmra.mxu0 %v32
  %v288 = vpop.f32.mrf.mxu0
  %v289 = vadd.f32 0.0, %v288
  %v290 = vpop.f32.mrf.mxu0
  %291 = vdwg.mxu0
  %v296 = vcombine.high %v274, %v274
  %v297 = vcombine.high %v279, %v279
  %v298 = vcombine.high %v284, %v284
  %v299 = vcombine.high %v289, %v289
  %v304 = vlaneseq
  %v305 = vshrl.u32 %v304, 7
  %v306 = vsub.s32 0, %v305
  %v307 = vrot.slane %v162, %v306
  %v308 = vlaneseq
  %v309 = vshrl.u32 %v308, 7
  %v310 = vsub.s32 0, %v309
  %v311 = vrot.slane %v176, %v310
  %v312 = vlaneseq
  %v313 = vshrl.u32 %v312, 7
  %v314 = vsub.s32 0, %v313
  %v315 = vrot.slane %v184, %v314
  %v316 = vlaneseq
  %v317 = vshrl.u32 %v316, 7
  %v318 = vsub.s32 0, %v317
  %v319 = vrot.slane %v186, %v318
  %v320 = vlaneseq
  %v321 = vshrl.u32 %v320, 7
  %v322 = vsub.s32 0, %v321
  %v323 = vrot.slane %v169, %v322
  %v324 = vlaneseq
  %v325 = vshrl.u32 %v324, 7
  %v326 = vsub.s32 0, %v325
  %v327 = vrot.slane %v183, %v326
  %v328 = vlaneseq
  %v329 = vshrl.u32 %v328, 7
  %v330 = vsub.s32 0, %v329
  %v331 = vrot.slane %v185, %v330
  %v332 = vlaneseq
  %v333 = vshrl.u32 %v332, 7
  %v334 = vsub.s32 0, %v333
  %v335 = vrot.slane %v187, %v334
  %v344 = vadd.f32 %v307, %v136
  %v345 = vadd.f32 %v311, %v136
  %v346 = vadd.f32 %v315, %v136
  %v347 = vadd.f32 %v319, %v136
  %v348 = vadd.f32 %v323, %v189
  %v349 = vadd.f32 %v327, %v189
  %v350 = vadd.f32 %v331, %v189
  %v351 = vadd.f32 %v335, %v189
  %v352 = vadd.f32 %v344, %v274
  %v353 = vadd.f32 %v345, %v296
  %v354 = vadd.f32 %v346, %v279
  %v355 = vadd.f32 %v347, %v297
  %v356 = vadd.f32 %v348, %v284
  %v357 = vadd.f32 %v349, %v298
  %v358 = vadd.f32 %v350, %v289
  %v359 = vadd.f32 %v351, %v299
  %v360 = vlaneseq
  %v361 = vshrl.u32 %v360, 7
  %v362 = vsub.s32 1, %v361
  %v363 = vrot.slane %v34, %v362
  %v364 = vadd.f32 %v352, %v363
  %v365 = vadd.f32 %v353, %v363
  %v366 = vadd.f32 %v354, %v363
  %v367 = vadd.f32 %v355, %v363
  %v368 = vadd.f32 %v356, %v363
  %v369 = vadd.f32 %v357, %v363
  %v370 = vadd.f32 %v358, %v363
  %v371 = vadd.f32 %v359, %v363
  %v372 = vtanh.pop %v364
  %v373 = vtanh.pop %v365
  %v374 = vtanh.pop %v366
  %v375 = vtanh.pop %v367
  %v376 = vtanh.pop %v368
  %v377 = vtanh.pop %v369
  %v378 = vtanh.pop %v370
  %v379 = vtanh.pop %v371
  %v380 = vld [vmem:[%s4 + $0x80] sm:$0xff]
  %v381 = vld [vmem:[%s4 + $0x88] sm:$0xff]
  %v382 = vld [vmem:[%s4 + $0x90] sm:$0xff]
  %v383 = vld [vmem:[%s4 + $0x98] sm:$0xff]
  %v384 = vld [vmem:[%s4 + $0xa0] sm:$0xff]
  %v385 = vld [vmem:[%s4 + $0xa8] sm:$0xff]
  %v386 = vld [vmem:[%s4 + $0xb0] sm:$0xff]
  %v387 = vld [vmem:[%s4 + $0xb8] sm:$0xff]
  %v388 = vld [vmem:[%s4 + $0xc0] sm:$0xff]
  %v389 = vld [vmem:[%s4 + $0xc8] sm:$0xff]
  %v390 = vld [vmem:[%s4 + $0xd0] sm:$0xff]
  %v391 = vld [vmem:[%s4 + $0xd8] sm:$0xff]
  %v392 = vld [vmem:[%s4 + $0xe0] sm:$0xff]
  %v393 = vld [vmem:[%s4 + $0xe8] sm:$0xff]
  %v394 = vld [vmem:[%s4 + $0xf0] sm:$0xff]
  %v395 = vld [vmem:[%s4 + $0xf8] sm:$0xff]
  %v404 = vcombine.low %v372, %v373
  %v405 = vcombine.low %v374, %v375
  %v406 = vcombine.low %v376, %v377
  %v407 = vcombine.low %v378, %v379
  %412 = vmatprep.subr.mxu0 0.0
  %413 = vmatpush1.msra.mxu0 %v395
  %414 = vmatprep.subr.mxu0 0.0
  %415 = vmatpush1.msra.mxu0 %v394
  %416 = vmatprep.subr.mxu0 0.0
  %417 = vmatpush1.msra.mxu0 %v393
  %418 = vmatprep.subr.mxu0 0.0
  %419 = vmatpush1.msra.mxu0 %v392
  %420 = vmatprep.subr.mxu0 0.0
  %421 = vmatpush1.msra.mxu0 %v391
  %422 = vmatprep.subr.mxu0 0.0
  %423 = vmatpush1.msra.mxu0 %v390
  %424 = vmatprep.subr.mxu0 0.0
  %425 = vmatpush1.msra.mxu0 %v389
  %426 = vmatprep.subr.mxu0 0.0
  %427 = vmatpush1.msra.mxu0 %v388
  %428 = vmatprep.subr.mxu0 0.0
  %429 = vmatpush1.msra.mxu0 %v387
  %430 = vmatprep.subr.mxu0 0.0
  %431 = vmatpush1.msra.mxu0 %v386
  %432 = vmatprep.subr.mxu0 0.0
  %433 = vmatpush1.msra.mxu0 %v385
  %434 = vmatprep.subr.mxu0 0.0
  %435 = vmatpush1.msra.mxu0 %v384
  %436 = vmatprep.subr.mxu0 0.0
  %437 = vmatpush1.msra.mxu0 %v383
  %438 = vmatprep.subr.mxu0 0.0
  %439 = vmatpush1.msra.mxu0 %v382
  %440 = vmatprep.subr.mxu0 0.0
  %441 = vmatpush1.msra.mxu0 %v381
  %442 = vmatprep.subr.mxu0 0.0
  %443 = vmatpush1.msra.mxu0 %v380
  %444 = vmatprep.subr.mxu0 0.0
  %445 = vmatpush2.msra.mxu0 0.0
  %446 = vmatprep.subr.mxu0 0.0
  %447 = vmatpush2.msra.mxu0 0.0
  %448 = vmatprep.subr.mxu0 0.0
  %449 = vmatpush2.msra.mxu0 0.0
  %450 = vmatprep.subr.mxu0 0.0
  %451 = vmatpush2.msra.mxu0 0.0
  %452 = vmatprep.subr.mxu0 0.0
  %453 = vmatpush2.msra.mxu0 0.0
  %454 = vmatprep.subr.mxu0 0.0
  %455 = vmatpush2.msra.mxu0 0.0
  %456 = vmatprep.subr.mxu0 0.0
  %457 = vmatpush2.msra.mxu0 0.0
  %458 = vmatprep.subr.mxu0 0.0
  %459 = vmatpush2.msra.mxu0 0.0
  %460 = vmatprep.subr.mxu0 0.0
  %461 = vmatpush2.msra.mxu0 0.0
  %462 = vmatprep.subr.mxu0 0.0
  %463 = vmatpush2.msra.mxu0 0.0
  %464 = vmatprep.subr.mxu0 0.0
  %465 = vmatpush2.msra.mxu0 0.0
  %466 = vmatprep.subr.mxu0 0.0
  %467 = vmatpush2.msra.mxu0 0.0
  %468 = vmatprep.subr.mxu0 0.0
  %469 = vmatpush2.msra.mxu0 0.0
  %470 = vmatprep.subr.mxu0 0.0
  %471 = vmatpush2.msra.mxu0 0.0
  %472 = vmatprep.subr.mxu0 0.0
  %473 = vmatpush2.msra.mxu0 0.0
  %474 = vmatprep.subr.mxu0 0.0
  %475 = vmatpush2.msra.mxu0 0.0
  %476 = vmatprep.mubr.f32.mxu0 0.0
  %477 = vmatmul.mubr.f32.gmra.mxu0 %v404
  %v478 = vpop.f32.mrf.mxu0
  %v479 = vadd.f32 0.0, %v478
  %v480 = vpop.f32.mrf.mxu0
  %481 = vmatprep.mubr.f32.mxu0 0.0
  %482 = vmatmul.mubr.f32.gmra.mxu0 %v405
  %v483 = vpop.f32.mrf.mxu0
  %v484 = vadd.f32 0.0, %v483
  %v485 = vpop.f32.mrf.mxu0
  %486 = vmatprep.mubr.f32.mxu0 0.0
  %487 = vmatmul.mubr.f32.gmra.mxu0 %v406
  %v488 = vpop.f32.mrf.mxu0
  %v489 = vadd.f32 0.0, %v488
  %v490 = vpop.f32.mrf.mxu0
  %491 = vmatprep.mubr.f32.mxu0 0.0
  %492 = vmatmul.mubr.f32.gmra.mxu0 %v407
  %v493 = vpop.f32.mrf.mxu0
  %v494 = vadd.f32 0.0, %v493
  %v495 = vpop.f32.mrf.mxu0
  %496 = vdwg.mxu0
  %497 = vst [vmem:[%s8] sm:$0xff] %v479
  %498 = vst [vmem:[%s8 + $0x8] sm:$0xff] %v484
  %499 = vst [vmem:[%s8 + $0x10] sm:$0xff] %v489
  %500 = vst [vmem:[%s8 + $0x18] sm:$0xff] %v494
  %v501 = vlaneseq
  %v502 = vshrl.u32 %v501, 7
  %v503 = vsub.s32 0, %v502
  %v504 = vrot.slane %v34, %v503
  %v505 = vmul.f32 %v372, %v504
  %v506 = vmul.f32 %v373, %v504
  %v507 = vmul.f32 %v374, %v504
  %v508 = vmul.f32 %v375, %v504
  %v509 = vmul.f32 %v376, %v504
  %v510 = vmul.f32 %v377, %v504
  %v511 = vmul.f32 %v378, %v504
  %v512 = vmul.f32 %v379, %v504
  %vm513 = vcmask 1043456
  %v514 = vsel %vm513, %v505, 0.0
  %515 = vadd.xlane.f32.xlu0 %v514
  %v516 = vpop.xlane.xlu0 %515
  %v517 = vsel %vm513, %v506, 0.0
  %518 = vadd.xlane.f32.xlu0 %v517
  %v519 = vpop.xlane.xlu0 %518
  %v520 = vsel %vm513, %v507, 0.0
  %521 = vadd.xlane.f32.xlu0 %v520
  %v522 = vpop.xlane.xlu0 %521
  %v523 = vsel %vm513, %v508, 0.0
  %524 = vadd.xlane.f32.xlu0 %v523
  %v525 = vpop.xlane.xlu0 %524
  %v526 = vsel %vm513, %v509, 0.0
  %527 = vadd.xlane.f32.xlu0 %v526
  %v528 = vpop.xlane.xlu0 %527
  %v529 = vsel %vm513, %v510, 0.0
  %530 = vadd.xlane.f32.xlu0 %v529
  %v531 = vpop.xlane.xlu0 %530
  %v532 = vsel %vm513, %v511, 0.0
  %533 = vadd.xlane.f32.xlu0 %v532
  %v534 = vpop.xlane.xlu0 %533
  %v535 = vsel %vm513, %v512, 0.0
  %536 = vadd.xlane.f32.xlu0 %v535
  %v537 = vpop.xlane.xlu0 %536
  %v538 = vxor.u32 %v516, 2147483648
  %v539 = vxor.u32 %v519, 2147483648
  %v540 = vxor.u32 %v522, 2147483648
  %v541 = vxor.u32 %v525, 2147483648
  %v542 = vxor.u32 %v528, 2147483648
  %v543 = vxor.u32 %v531, 2147483648
  %v544 = vxor.u32 %v534, 2147483648
  %v545 = vxor.u32 %v537, 2147483648
  %v546 = vmul.f32 %v538, 1.442695
  %v547 = vpow.pop %v546
  %v548 = vmul.f32 %v539, 1.442695
  %v549 = vpow.pop %v548
  %v550 = vmul.f32 %v540, 1.442695
  %v551 = vpow.pop %v550
  %v552 = vmul.f32 %v541, 1.442695
  %v553 = vpow.pop %v552
  %v554 = vmul.f32 %v542, 1.442695
  %v555 = vpow.pop %v554
  %v556 = vmul.f32 %v543, 1.442695
  %v557 = vpow.pop %v556
  %v558 = vmul.f32 %v544, 1.442695
  %v559 = vpow.pop %v558
  %v560 = vmul.f32 %v545, 1.442695
  %v561 = vpow.pop %v560
  %v562 = vadd.f32 %v547, 1.0
  %v563 = vadd.f32 %v549, 1.0
  %v564 = vadd.f32 %v551, 1.0
  %v565 = vadd.f32 %v553, 1.0
  %v566 = vadd.f32 %v555, 1.0
  %v567 = vadd.f32 %v557, 1.0
  %v568 = vadd.f32 %v559, 1.0
  %v569 = vadd.f32 %v561, 1.0
  %v570 = vrcp.pop %v562
  %v571 = vmul.f32 1.0, %v570
  %v572 = vrcp.pop %v563
  %v573 = vmul.f32 1.0, %v572
  %v574 = vrcp.pop %v564
  %v575 = vmul.f32 1.0, %v574
  %v576 = vrcp.pop %v565
  %v577 = vmul.f32 1.0, %v576
  %v578 = vrcp.pop %v566
  %v579 = vmul.f32 1.0, %v578
  %v580 = vrcp.pop %v567
  %v581 = vmul.f32 1.0, %v580
  %v582 = vrcp.pop %v568
  %v583 = vmul.f32 1.0, %v582
  %v584 = vrcp.pop %v569
  %v585 = vmul.f32 1.0, %v584
  %v586 = vsel %vm513, %v571, 0.0
  %v587 = vrot.slane %v586, 4
  %v588 = vadd.f32 %v586, %v587
  %v589 = vrot.slane %v588, 2
  %v590 = vadd.f32 %v588, %v589
  %v591 = vrot.slane %v590, 1
  %v592 = vadd.f32 %v590, %v591
  %v593 = vsel %vm513, %v573, 0.0
  %v594 = vrot.slane %v593, 4
  %v595 = vadd.f32 %v593, %v594
  %v596 = vrot.slane %v595, 2
  %v597 = vadd.f32 %v595, %v596
  %v598 = vrot.slane %v597, 1
  %v599 = vadd.f32 %v597, %v598
  %v600 = vsel %vm513, %v575, 0.0
  %v601 = vrot.slane %v600, 4
  %v602 = vadd.f32 %v600, %v601
  %v603 = vrot.slane %v602, 2
  %v604 = vadd.f32 %v602, %v603
  %v605 = vrot.slane %v604, 1
  %v606 = vadd.f32 %v604, %v605
  %v607 = vsel %vm513, %v577, 0.0
  %v608 = vrot.slane %v607, 4
  %v609 = vadd.f32 %v607, %v608
  %v610 = vrot.slane %v609, 2
  %v611 = vadd.f32 %v609, %v610
  %v612 = vrot.slane %v611, 1
  %v613 = vadd.f32 %v611, %v612
  %v614 = vsel %vm513, %v579, 0.0
  %v615 = vrot.slane %v614, 4
  %v616 = vadd.f32 %v614, %v615
  %v617 = vrot.slane %v616, 2
  %v618 = vadd.f32 %v616, %v617
  %v619 = vrot.slane %v618, 1
  %v620 = vadd.f32 %v618, %v619
  %v621 = vsel %vm513, %v581, 0.0
  %v622 = vrot.slane %v621, 4
  %v623 = vadd.f32 %v621, %v622
  %v624 = vrot.slane %v623, 2
  %v625 = vadd.f32 %v623, %v624
  %v626 = vrot.slane %v625, 1
  %v627 = vadd.f32 %v625, %v626
  %v628 = vsel %vm513, %v583, 0.0
  %v629 = vrot.slane %v628, 4
  %v630 = vadd.f32 %v628, %v629
  %v631 = vrot.slane %v630, 2
  %v632 = vadd.f32 %v630, %v631
  %v633 = vrot.slane %v632, 1
  %v634 = vadd.f32 %v632, %v633
  %v635 = vsel %vm513, %v585, 0.0
  %v636 = vrot.slane %v635, 4
  %v637 = vadd.f32 %v635, %v636
  %v638 = vrot.slane %v637, 2
  %v639 = vadd.f32 %v637, %v638
  %v640 = vrot.slane %v639, 1
  %v641 = vadd.f32 %v639, %v640
  %vm642 = vcmp.eq.f32.partialorder %v592, 0.0
  %vm643 = vcmp.eq.f32.partialorder %v599, 0.0
  %vm644 = vcmp.eq.f32.partialorder %v606, 0.0
  %vm645 = vcmp.eq.f32.partialorder %v613, 0.0
  %vm646 = vcmp.eq.f32.partialorder %v620, 0.0
  %vm647 = vcmp.eq.f32.partialorder %v627, 0.0
  %vm648 = vcmp.eq.f32.partialorder %v634, 0.0
  %vm649 = vcmp.eq.f32.partialorder %v641, 0.0
  %v650 = vrcp.pop %v592
  %v651 = vmul.f32 1.0, %v650
  %v652 = vrcp.pop %v599
  %v653 = vmul.f32 1.0, %v652
  %v654 = vrcp.pop %v606
  %v655 = vmul.f32 1.0, %v654
  %v656 = vrcp.pop %v613
  %v657 = vmul.f32 1.0, %v656
  %v658 = vrcp.pop %v620
  %v659 = vmul.f32 1.0, %v658
  %v660 = vrcp.pop %v627
  %v661 = vmul.f32 1.0, %v660
  %v662 = vrcp.pop %v634
  %v663 = vmul.f32 1.0, %v662
  %v664 = vrcp.pop %v641
  %v665 = vmul.f32 1.0, %v664
  %v666 = vsel %vm642, 0.0, %v651
  %v667 = vsel %vm643, 0.0, %v653
  %v668 = vsel %vm644, 0.0, %v655
  %v669 = vsel %vm645, 0.0, %v657
  %v670 = vsel %vm646, 0.0, %v659
  %v671 = vsel %vm647, 0.0, %v661
  %v672 = vsel %vm648, 0.0, %v663
  %v673 = vsel %vm649, 0.0, %v665
  %v674 = vmul.f32 %v571, %v666
  %v675 = vmul.f32 %v573, %v667
  %v676 = vmul.f32 %v575, %v668
  %v677 = vmul.f32 %v577, %v669
  %v678 = vmul.f32 %v579, %v670
  %v679 = vmul.f32 %v581, %v671
  %v680 = vmul.f32 %v583, %v672
  %v681 = vmul.f32 %v585, %v673
  %v683 = vcombine.high %v28, %v28
  %v685 = vmul.f32 %v674, %v28
  %v686 = vmul.f32 %v675, %v28
  %v687 = vmul.f32 %v676, %v28
  %v688 = vmul.f32 %v677, %v28
  %v689 = vmul.f32 %v678, %v683
  %v690 = vmul.f32 %v679, %v683
  %v691 = vmul.f32 %v680, %v683
  %v692 = vmul.f32 %v681, %v683
  %v693 = vsel %vm513, %v685, 0.0
  %v694 = vrot.slane %v693, 4
  %v695 = vadd.f32 %v693, %v694
  %v696 = vrot.slane %v695, 2
  %v697 = vadd.f32 %v695, %v696
  %v698 = vrot.slane %v697, 1
  %v699 = vadd.f32 %v697, %v698
  %v700 = vsel %vm513, %v686, 0.0
  %v701 = vrot.slane %v700, 4
  %v702 = vadd.f32 %v700, %v701
  %v703 = vrot.slane %v702, 2
  %v704 = vadd.f32 %v702, %v703
  %v705 = vrot.slane %v704, 1
  %v706 = vadd.f32 %v704, %v705
  %v707 = vsel %vm513, %v687, 0.0
  %v708 = vrot.slane %v707, 4
  %v709 = vadd.f32 %v707, %v708
  %v710 = vrot.slane %v709, 2
  %v711 = vadd.f32 %v709, %v710
  %v712 = vrot.slane %v711, 1
  %v713 = vadd.f32 %v711, %v712
  %v714 = vsel %vm513, %v688, 0.0
  %v715 = vrot.slane %v714, 4
  %v716 = vadd.f32 %v714, %v715
  %v717 = vrot.slane %v716, 2
  %v718 = vadd.f32 %v716, %v717
  %v719 = vrot.slane %v718, 1
  %v720 = vadd.f32 %v718, %v719
  %v721 = vsel %vm513, %v689, 0.0
  %v722 = vrot.slane %v721, 4
  %v723 = vadd.f32 %v721, %v722
  %v724 = vrot.slane %v723, 2
  %v725 = vadd.f32 %v723, %v724
  %v726 = vrot.slane %v725, 1
  %v727 = vadd.f32 %v725, %v726
  %v728 = vsel %vm513, %v690, 0.0
  %v729 = vrot.slane %v728, 4
  %v730 = vadd.f32 %v728, %v729
  %v731 = vrot.slane %v730, 2
  %v732 = vadd.f32 %v730, %v731
  %v733 = vrot.slane %v732, 1
  %v734 = vadd.f32 %v732, %v733
  %v735 = vsel %vm513, %v691, 0.0
  %v736 = vrot.slane %v735, 4
  %v737 = vadd.f32 %v735, %v736
  %v738 = vrot.slane %v737, 2
  %v739 = vadd.f32 %v737, %v738
  %v740 = vrot.slane %v739, 1
  %v741 = vadd.f32 %v739, %v740
  %v742 = vsel %vm513, %v692, 0.0
  %v743 = vrot.slane %v742, 4
  %v744 = vadd.f32 %v742, %v743
  %v745 = vrot.slane %v744, 2
  %v746 = vadd.f32 %v744, %v745
  %v747 = vrot.slane %v746, 1
  %v748 = vadd.f32 %v746, %v747
  %vm757 = vcmask 1041409
  %v758 = vsel %vm757, %v706, %v699
  %vm759 = vcmask 1042434
  %v760 = vsel %vm759, %v713, %v758
  %vm761 = vcmask 1043459
  %v762 = vsel %vm761, %v720, %v760
  %vm763 = vcmask 1044484
  %v764 = vsel %vm763, %v727, %v762
  %vm765 = vcmask 1045509
  %v766 = vsel %vm765, %v734, %v764
  %vm767 = vcmask 1046534
  %v768 = vsel %vm767, %v741, %v766
  %vm769 = vcmask 1047559
  %v770 = vsel %vm769, %v748, %v768
  %v772 = vld [vmem:[%s5] sm:$0xff]
  %v773 = vld [vmem:[%s5 + $0x8] sm:$0xff]
  %v774 = vld [vmem:[%s5 + $0x10] sm:$0xff]
  %v775 = vld [vmem:[%s5 + $0x18] sm:$0xff]
  %v776 = vld [vmem:[%s5 + $0x20] sm:$0xff]
  %v777 = vld [vmem:[%s5 + $0x28] sm:$0xff]
  %v778 = vld [vmem:[%s5 + $0x30] sm:$0xff]
  %v779 = vld [vmem:[%s5 + $0x38] sm:$0xff]
  %v780 = vld [vmem:[%s5 + $0x40] sm:$0xff]
  %v781 = vld [vmem:[%s5 + $0x48] sm:$0xff]
  %v782 = vld [vmem:[%s5 + $0x50] sm:$0xff]
  %v783 = vld [vmem:[%s5 + $0x58] sm:$0xff]
  %v784 = vld [vmem:[%s5 + $0x60] sm:$0xff]
  %v785 = vld [vmem:[%s5 + $0x68] sm:$0xff]
  %v786 = vld [vmem:[%s5 + $0x70] sm:$0xff]
  %v787 = vld [vmem:[%s5 + $0x78] sm:$0xff]
  %v788 = vld [vmem:[%s5 + $0x80] sm:$0xff]
  %v789 = vld [vmem:[%s5 + $0x88] sm:$0xff]
  %v790 = vld [vmem:[%s5 + $0x90] sm:$0xff]
  %v791 = vld [vmem:[%s5 + $0x98] sm:$0xff]
  %v792 = vld [vmem:[%s5 + $0xa0] sm:$0xff]
  %v793 = vld [vmem:[%s5 + $0xa8] sm:$0xff]
  %v794 = vld [vmem:[%s5 + $0xb0] sm:$0xff]
  %v795 = vld [vmem:[%s5 + $0xb8] sm:$0xff]
  %v796 = vld [vmem:[%s5 + $0xc0] sm:$0xff]
  %v797 = vld [vmem:[%s5 + $0xc8] sm:$0xff]
  %v798 = vld [vmem:[%s5 + $0xd0] sm:$0xff]
  %v799 = vld [vmem:[%s5 + $0xd8] sm:$0xff]
  %v800 = vld [vmem:[%s5 + $0xe0] sm:$0xff]
  %v801 = vld [vmem:[%s5 + $0xe8] sm:$0xff]
  %v802 = vld [vmem:[%s5 + $0xf0] sm:$0xff]
  %v803 = vld [vmem:[%s5 + $0xf8] sm:$0xff]
  %v804 = vld [vmem:[%s5 + $0x100] sm:$0xff]
  %v805 = vld [vmem:[%s5 + $0x108] sm:$0xff]
  %v806 = vld [vmem:[%s5 + $0x110] sm:$0xff]
  %v807 = vld [vmem:[%s5 + $0x118] sm:$0xff]
  %v808 = vld [vmem:[%s5 + $0x120] sm:$0xff]
  %v809 = vld [vmem:[%s5 + $0x128] sm:$0xff]
  %v810 = vld [vmem:[%s5 + $0x130] sm:$0xff]
  %v811 = vld [vmem:[%s5 + $0x138] sm:$0xff]
  %v812 = vld [vmem:[%s5 + $0x140] sm:$0xff]
  %v813 = vld [vmem:[%s5 + $0x148] sm:$0xff]
  %v814 = vld [vmem:[%s5 + $0x150] sm:$0xff]
  %v815 = vld [vmem:[%s5 + $0x158] sm:$0xff]
  %v816 = vld [vmem:[%s5 + $0x160] sm:$0xff]
  %v817 = vld [vmem:[%s5 + $0x168] sm:$0xff]
  %v818 = vld [vmem:[%s5 + $0x170] sm:$0xff]
  %v819 = vld [vmem:[%s5 + $0x178] sm:$0xff]
  %v820 = vlaneseq
  %v821 = vshrl.u32 %v820, 7
  %v822 = vsub.s32 2, %v821
  %v823 = vrot.slane %v34, %v822
  %824 = vmatprep.subr.mxu0 0.0
  %825 = vmatpush1.msra.mxu0 %v787
  %826 = vmatprep.subr.mxu0 0.0
  %827 = vmatpush1.msra.mxu0 %v786
  %828 = vmatprep.subr.mxu0 0.0
  %829 = vmatpush1.msra.mxu0 %v785
  %830 = vmatprep.subr.mxu0 0.0
  %831 = vmatpush1.msra.mxu0 %v784
  %832 = vmatprep.subr.mxu0 0.0
  %833 = vmatpush1.msra.mxu0 %v783
  %834 = vmatprep.subr.mxu0 0.0
  %835 = vmatpush1.msra.mxu0 %v782
  %836 = vmatprep.subr.mxu0 0.0
  %837 = vmatpush1.msra.mxu0 %v781
  %838 = vmatprep.subr.mxu0 0.0
  %839 = vmatpush1.msra.mxu0 %v780
  %840 = vmatprep.subr.mxu0 0.0
  %841 = vmatpush1.msra.mxu0 %v779
  %842 = vmatprep.subr.mxu0 0.0
  %843 = vmatpush1.msra.mxu0 %v778
  %844 = vmatprep.subr.mxu0 0.0
  %845 = vmatpush1.msra.mxu0 %v777
  %846 = vmatprep.subr.mxu0 0.0
  %847 = vmatpush1.msra.mxu0 %v776
  %848 = vmatprep.subr.mxu0 0.0
  %849 = vmatpush1.msra.mxu0 %v775
  %850 = vmatprep.subr.mxu0 0.0
  %851 = vmatpush1.msra.mxu0 %v774
  %852 = vmatprep.subr.mxu0 0.0
  %853 = vmatpush1.msra.mxu0 %v773
  %854 = vmatprep.subr.mxu0 0.0
  %855 = vmatpush1.msra.mxu0 %v772
  %856 = vmatprep.subr.mxu0 0.0
  %857 = vmatpush2.msra.mxu0 %v803
  %858 = vmatprep.subr.mxu0 0.0
  %859 = vmatpush2.msra.mxu0 %v802
  %860 = vmatprep.subr.mxu0 0.0
  %861 = vmatpush2.msra.mxu0 %v801
  %862 = vmatprep.subr.mxu0 0.0
  %863 = vmatpush2.msra.mxu0 %v800
  %864 = vmatprep.subr.mxu0 0.0
  %865 = vmatpush2.msra.mxu0 %v799
  %866 = vmatprep.subr.mxu0 0.0
  %867 = vmatpush2.msra.mxu0 %v798
  %868 = vmatprep.subr.mxu0 0.0
  %869 = vmatpush2.msra.mxu0 %v797
  %870 = vmatprep.subr.mxu0 0.0
  %871 = vmatpush2.msra.mxu0 %v796
  %872 = vmatprep.subr.mxu0 0.0
  %873 = vmatpush2.msra.mxu0 %v795
  %874 = vmatprep.subr.mxu0 0.0
  %875 = vmatpush2.msra.mxu0 %v794
  %876 = vmatprep.subr.mxu0 0.0
  %877 = vmatpush2.msra.mxu0 %v793
  %878 = vmatprep.subr.mxu0 0.0
  %879 = vmatpush2.msra.mxu0 %v792
  %880 = vmatprep.subr.mxu0 0.0
  %881 = vmatpush2.msra.mxu0 %v791
  %882 = vmatprep.subr.mxu0 0.0
  %883 = vmatpush2.msra.mxu0 %v790
  %884 = vmatprep.subr.mxu0 0.0
  %885 = vmatpush2.msra.mxu0 %v789
  %886 = vmatprep.subr.mxu0 0.0
  %887 = vmatpush2.msra.mxu0 %v788
  %888 = vmatprep.mubr.f32.mxu0 %v28
  %889 = vmatmul.mubr.f32.gmra.mxu0 %v770
  %v890 = vpop.f32.mrf.mxu0
  %v891 = vadd.f32 %v823, %v890
  %v892 = vpop.f32.mrf.mxu0
  %893 = vdwg.mxu0
  %894 = vmatprep.subr.mxu0 0.0
  %895 = vmatpush1.msra.mxu0 %v819
  %896 = vmatprep.subr.mxu0 0.0
  %897 = vmatpush1.msra.mxu0 %v818
  %898 = vmatprep.subr.mxu0 0.0
  %899 = vmatpush1.msra.mxu0 %v817
  %900 = vmatprep.subr.mxu0 0.0
  %901 = vmatpush1.msra.mxu0 %v816
  %902 = vmatprep.subr.mxu0 0.0
  %903 = vmatpush1.msra.mxu0 %v815
  %904 = vmatprep.subr.mxu0 0.0
  %905 = vmatpush1.msra.mxu0 %v814
  %906 = vmatprep.subr.mxu0 0.0
  %907 = vmatpush1.msra.mxu0 %v813
  %908 = vmatprep.subr.mxu0 0.0
  %909 = vmatpush1.msra.mxu0 %v812
  %910 = vmatprep.subr.mxu0 0.0
  %911 = vmatpush1.msra.mxu0 %v811
  %912 = vmatprep.subr.mxu0 0.0
  %913 = vmatpush1.msra.mxu0 %v810
  %914 = vmatprep.subr.mxu0 0.0
  %915 = vmatpush1.msra.mxu0 %v809
  %916 = vmatprep.subr.mxu0 0.0
  %917 = vmatpush1.msra.mxu0 %v808
  %918 = vmatprep.subr.mxu0 0.0
  %919 = vmatpush1.msra.mxu0 %v807
  %920 = vmatprep.subr.mxu0 0.0
  %921 = vmatpush1.msra.mxu0 %v806
  %922 = vmatprep.subr.mxu0 0.0
  %923 = vmatpush1.msra.mxu0 %v805
  %924 = vmatprep.subr.mxu0 0.0
  %925 = vmatpush1.msra.mxu0 %v804
  %926 = vmatprep.subr.mxu0 0.0
  %927 = vmatpush2.msra.mxu0 0.0
  %928 = vmatprep.subr.mxu0 0.0
  %929 = vmatpush2.msra.mxu0 0.0
  %930 = vmatprep.subr.mxu0 0.0
  %931 = vmatpush2.msra.mxu0 0.0
  %932 = vmatprep.subr.mxu0 0.0
  %933 = vmatpush2.msra.mxu0 0.0
  %934 = vmatprep.subr.mxu0 0.0
  %935 = vmatpush2.msra.mxu0 0.0
  %936 = vmatprep.subr.mxu0 0.0
  %937 = vmatpush2.msra.mxu0 0.0
  %938 = vmatprep.subr.mxu0 0.0
  %939 = vmatpush2.msra.mxu0 0.0
  %940 = vmatprep.subr.mxu0 0.0
  %941 = vmatpush2.msra.mxu0 0.0
  %942 = vmatprep.subr.mxu0 0.0
  %943 = vmatpush2.msra.mxu0 0.0
  %944 = vmatprep.subr.mxu0 0.0
  %945 = vmatpush2.msra.mxu0 0.0
  %946 = vmatprep.subr.mxu0 0.0
  %947 = vmatpush2.msra.mxu0 0.0
  %948 = vmatprep.subr.mxu0 0.0
  %949 = vmatpush2.msra.mxu0 0.0
  %950 = vmatprep.subr.mxu0 0.0
  %951 = vmatpush2.msra.mxu0 0.0
  %952 = vmatprep.subr.mxu0 0.0
  %953 = vmatpush2.msra.mxu0 0.0
  %954 = vmatprep.subr.mxu0 0.0
  %955 = vmatpush2.msra.mxu0 0.0
  %956 = vmatprep.subr.mxu0 0.0
  %957 = vmatpush2.msra.mxu0 0.0
  %958 = vmatprep.mubr.f32.mxu0 0.0
  %959 = vmatmul.mubr.f32.gmra.mxu0 %v33
  %v960 = vpop.f32.mrf.mxu0
  %v961 = vadd.f32 %v891, %v960
  %v962 = vpop.f32.mrf.mxu0
  %963 = vdwg.mxu0
  %v964 = vtanh.pop %v961
  %965 = vst [vmem:[%s7] sm:$0xff] %v964
  // Predicated region
  $region30: #{coupled_ode_forward.1} parent=0 // pred_check
    _
  $region31: #{coupled_ode_forward.1} parent=0 // pred_check_branch
    %967 = sbr.rel (0) target = $region33
  $region32: #{coupled_ode_forward.1} parent=0 // pred_region
    _
  $region33: #{coupled_ode_forward.1} parent=0 // pred_fallthru
    _
  // Predicated region
  $region34: #{coupled_ode_forward.1} parent=0 // pred_check
    _
  $region35: #{coupled_ode_forward.1} parent=0 // pred_check_branch
    %969 = sbr.rel (0) target = $region37
  $region36: #{coupled_ode_forward.1} parent=0 // pred_region
    _
  $region37: #{coupled_ode_forward.1} parent=0 // pred_fallthru
    _
  // Predicated region
  $region38: #{coupled_ode_forward.1} parent=0 // pred_check
    _
  $region39: #{coupled_ode_forward.1} parent=0 // pred_check_branch
    %971 = sbr.rel (0) target = $region41
  $region40: #{coupled_ode_forward.1} parent=0 // pred_region
    _
  $region41: #{coupled_ode_forward.1} parent=0 // pred_fallthru
    _
  // Predicated region
  $region42: #{coupled_ode_forward.1} parent=0 // pred_check
    _
  $region43: #{coupled_ode_forward.1} parent=0 // pred_check_branch
    %973 = sbr.rel (0) target = $region45
  $region44: #{coupled_ode_forward.1} parent=0 // pred_region
    _
  $region45: #{coupled_ode_forward.1} parent=0 // pred_fallthru
    _

</llo_original>
